<compile_context>
chip_gen: v7x
topology: tpu7x:2x2x1
jax: 0.10.0
libtpu: 0.0.40
codegen_flags: <defaults>
</compile_context>

<pallas_src>
import functools

import jax
import jax.numpy as jnp
from jax.experimental import pallas as pl
from jax.experimental.pallas import tpu as pltpu

LANE = 128
SUBLANE = 8


def _round_up(n, m):
    return ((n + m - 1) // m) * m


# ----------------------------- Pallas kernel ------------------------------ #

def _fused_mlp_kernel(x_ref, *refs, n_layers, first_cin):
    """Whole MLP in one kernel: (Linear -> ReLU) * (L-1) -> Linear.

    refs = (w0, b0, w1, b1, ..., w_{L-1}, b_{L-1}, o_ref).
    Layer 0 (K = first_cin, tiny) uses broadcast FMAs on the VPU; the remaining
    128-padded layers use the MXU with f32 accumulation.  Intermediates never
    leave VMEM; only the final TRUE-width (lane-narrow) block is stored.
    """
    o_ref = refs[-1]
    wb = refs[:-1]

    x = x_ref[...].astype(jnp.float32)

    # ---- layer 0: K is tiny -> skip the MXU (avoids MXU fill/drain latency).
    w0 = wb[0][...]                      # [first_cin, H0_pad]
    b0 = wb[1][...]                      # [1, H0_pad]
    h = b0 + x[:, 0:1] * w0[0:1, :]      # broadcasts to [B, H0_pad]
    for k in range(1, first_cin):
        h = h + x[:, k:k + 1] * w0[k:k + 1, :]
    if n_layers > 1:
        h = jnp.maximum(h, 0.0)

    # ---- remaining layers on the MXU (all dims padded to 128 lanes).
    for i in range(1, n_layers):
        w = wb[2 * i][...]               # [Hp_{i-1}, Hp_i]
        b = wb[2 * i + 1][...]           # [1, Hp_i]
        h = jnp.dot(h, w, preferred_element_type=jnp.float32) + b
        if i < n_layers - 1:
            h = jnp.maximum(h, 0.0)

    # Store only the true output width: padded lanes are dropped here, so the
    # HBM writeback is B*final_out*4 bytes (64x less than the padded block).
    final_out = o_ref.shape[-1]
    o_ref[...] = h[:, :final_out].astype(o_ref.dtype)


# ------------------------------- wrapper ----------------------------------- #

def _pad_params(params, in_features):
    """Zero-pad each layer's out dim (and the next layer's in dim) to a
    multiple of 128 lanes.  Layer 0 keeps its raw tiny input dim (VPU path).
    Zero padding is exact: padded activations are 0, ReLU(0)=0, and padded
    weight rows multiply zero activations, so the valid lanes are unchanged.
    Params are kept in float32 (independent of x dtype) to match the f32
    PyTorch reference."""
    padded = []
    prev_out_pad = in_features
    for i, (w, b) in enumerate(params):
        kin, kout = w.shape
        in_pad = kin if i == 0 else prev_out_pad
        out_pad = _round_up(kout, LANE)
        wp = jnp.zeros((in_pad, out_pad), jnp.float32).at[:kin, :kout].set(
            w.astype(jnp.float32))
        bp = jnp.zeros((1, out_pad), jnp.float32).at[:, :kout].set(
            b.astype(jnp.float32)[None, :])
        padded += [wp, bp]
        prev_out_pad = out_pad
    return padded


def _choose_batch_tile(batch, batch_tile):
    """Pick a batch tile: at least ~16 grid steps on big batches (so the v7x
    megacore split has multiple pipelined steps per core), but never below
    512 rows per step (per-step pipeline overhead ~0.35 us dominates smaller
    tiles).  Always a multiple of 8 sublanes."""
    tb = min(batch_tile, max(512, _round_up(pl.cdiv(batch, 16), SUBLANE)))
    return _round_up(tb, SUBLANE)


def model2_forward(params, x, *, batch_tile=1024, small_batch_max=1024):
    """Forward pass of Model2: x [B, 2] -> score [B, 2] via one fused kernel."""
    assert x.shape[1] == 2
    batch, cin = x.shape
    n_layers = len(params)
    final_out = params[-1][0].shape[1]
    padded = _pad_params(params, cin)

    kernel = functools.partial(
        _fused_mlp_kernel, n_layers=n_layers, first_cin=cin)

    if batch <= small_batch_max:
        # Small batch: no grid at all -> no pipeline prologue/epilogue and no
        # double-buffering of single-use blocks; everything resident in VMEM.
        vmem = pltpu.MemorySpace.VMEM
        return pl.pallas_call(
            kernel,
            out_shape=jax.ShapeDtypeStruct((batch, final_out), x.dtype),
            in_specs=[pl.BlockSpec(memory_space=vmem)] * (1 + len(padded)),
            out_specs=pl.BlockSpec(memory_space=vmem),
        )(x, *padded)

    # Large batch: tile the batch dim with a cdiv grid.  Non-multiple batches
    # are zero-padded (cheap: [B, 2]) so per-step VMEM stays constant instead
    # of falling back to a whole-array-resident path (v7x VMEM is only 64 MiB).
    tb = _choose_batch_tile(batch, batch_tile)
    n_steps = pl.cdiv(batch, tb)
    batch_pad = n_steps * tb
    if batch_pad != batch:
        x_in = jnp.zeros((batch_pad, cin), x.dtype).at[:batch].set(x)
    else:
        x_in = x

    cp_kwargs = dict(dimension_semantics=("parallel",))
    if tb >= 4096:
        # v5e's scoped-VMEM default is 16 MiB; very large tiles need headroom.
        cp_kwargs["vmem_limit_bytes"] = 48 * 1024 * 1024

    y = pl.pallas_call(
        kernel,
        out_shape=jax.ShapeDtypeStruct((batch_pad, final_out), x.dtype),
        grid=(n_steps,),
        in_specs=[pl.BlockSpec((tb, cin), lambda i: (i, 0))]
        # Constant index_map: weight/bias blocks are not re-DMA'd per step.
        + [pl.BlockSpec(p.shape, lambda i: (0, 0)) for p in padded],
        out_specs=pl.BlockSpec((tb, final_out), lambda i: (i, 0)),
        compiler_params=pltpu.CompilerParams(**cp_kwargs),
    )(x_in, *padded)

    return y[:batch] if batch_pad != batch else y


# ------------------------------ Model2 port -------------------------------- #

def init_model2_params(key, in_features, layer_widths):
    """Deterministic 'Kaiming uniform' init (a = sqrt(3/n)), matching
    init_weights(..., 'Kaiming uniform'); bias uses PyTorch's default
    U(-1/sqrt(n), 1/sqrt(n))."""
    ins = [in_features] + list(layer_widths)
    outs = list(layer_widths) + [2]
    params = []
    for n, m in zip(ins, outs):
        key, kw, kb = jax.random.split(key, 3)
        a = (3.0 / n) ** 0.5
        w = jax.random.uniform(kw, (n, m), jnp.float32, minval=-a, maxval=a)
        ab = (1.0 / n) ** 0.5
        bias = jax.random.uniform(kb, (m,), jnp.float32, minval=-ab, maxval=ab)
        params.append((w, bias))
    return params


def model2_reference(params, x):
    """Pure-JAX reference for verification."""
    score = x
    for i, (w, b) in enumerate(params):
        score = score @ w + b
        if i < len(params) - 1:
            score = jnp.maximum(score, 0.0)
    return score


# ---------------------------------- main ----------------------------------- #

if __name__ == "__main__":
    key = jax.random.PRNGKey(0)
    k_params, k_x1, k_x2 = jax.random.split(key, 3)

    in_features = 2
    layer_widths = [32, 32]          # hidden widths; output is fixed to 2

    params = init_model2_params(k_params, in_features, layer_widths)

    # Small batch -> single-invocation (no-grid) fused kernel.
    x_small = jax.random.normal(k_x1, (8, in_features), jnp.float32)
    out_small = jax.block_until_ready(model2_forward(params, x_small))
    ref_small = model2_reference(params, x_small)
    assert out_small.shape == (8, 2)
    assert jnp.allclose(out_small, ref_small, atol=1e-5, rtol=1e-5), (
        out_small, ref_small)

    # Larger, non-multiple-of-tile batch -> zero-padded cdiv "parallel" grid.
    x_large = jax.random.normal(k_x2, (4100, in_features), jnp.float32)
    out_large = jax.block_until_ready(model2_forward(params, x_large))
    ref_large = model2_reference(params, x_large)
    assert out_large.shape == (4100, 2)
    assert jnp.allclose(out_large, ref_large, atol=1e-4, rtol=1e-4), (
        out_large, ref_large)

    print("KERNEL_OK")
</pallas_src>

<mosaic_0001>
module attributes {stable_mosaic.version = 11 : i64} {
  func.func @_fused_mlp_kernel(%arg0: memref<8x2xf32, #tpu.memory_space<vmem>>, %arg1: memref<2x128xf32, #tpu.memory_space<vmem>>, %arg2: memref<1x128xf32, #tpu.memory_space<vmem>>, %arg3: memref<128x128xf32, #tpu.memory_space<vmem>>, %arg4: memref<1x128xf32, #tpu.memory_space<vmem>>, %arg5: memref<128x128xf32, #tpu.memory_space<vmem>>, %arg6: memref<1x128xf32, #tpu.memory_space<vmem>>, %arg7: memref<8x2xf32, #tpu.memory_space<vmem>>) attributes {dimension_semantics = [], scalar_prefetch = 0 : i64, scratch_operands = 0 : i64, tpu.core_type = #tpu.core_type<tc>} {
    %c0 = arith.constant 0 : index
    %c0_0 = arith.constant 0 : index
    %0 = vector.load %arg0[%c0, %c0_0] : memref<8x2xf32, #tpu.memory_space<vmem>>, vector<8x2xf32>
    %c0_1 = arith.constant 0 : index
    %c0_2 = arith.constant 0 : index
    %1 = vector.load %arg1[%c0_1, %c0_2] : memref<2x128xf32, #tpu.memory_space<vmem>>, vector<2x128xf32>
    %c0_3 = arith.constant 0 : index
    %c0_4 = arith.constant 0 : index
    %2 = vector.load %arg2[%c0_3, %c0_4] : memref<1x128xf32, #tpu.memory_space<vmem>>, vector<1x128xf32>
    %3 = vector.extract_strided_slice %0 {offsets = [0, 0], sizes = [8, 1], strides = [1, 1]} : vector<8x2xf32> to vector<8x1xf32>
    %4 = vector.extract_strided_slice %1 {offsets = [0, 0], sizes = [1, 128], strides = [1, 1]} : vector<2x128xf32> to vector<1x128xf32>
    %5 = vector.broadcast %3 : vector<8x1xf32> to vector<8x128xf32>
    %6 = vector.broadcast %4 : vector<1x128xf32> to vector<8x128xf32>
    %7 = arith.mulf %5, %6 : vector<8x128xf32>
    %8 = vector.broadcast %2 : vector<1x128xf32> to vector<8x128xf32>
    %9 = arith.addf %8, %7 : vector<8x128xf32>
    %10 = vector.extract_strided_slice %0 {offsets = [0, 1], sizes = [8, 1], strides = [1, 1]} : vector<8x2xf32> to vector<8x1xf32>
    %11 = vector.extract_strided_slice %1 {offsets = [1, 0], sizes = [1, 128], strides = [1, 1]} : vector<2x128xf32> to vector<1x128xf32>
    %12 = vector.broadcast %10 : vector<8x1xf32> to vector<8x128xf32>
    %13 = vector.broadcast %11 : vector<1x128xf32> to vector<8x128xf32>
    %14 = arith.mulf %12, %13 : vector<8x128xf32>
    %15 = arith.addf %9, %14 : vector<8x128xf32>
    %cst = arith.constant 0.000000e+00 : f32
    %16 = vector.broadcast %cst : f32 to vector<8x128xf32>
    %17 = arith.maximumf %15, %16 : vector<8x128xf32>
    %c0_5 = arith.constant 0 : index
    %c0_6 = arith.constant 0 : index
    %18 = vector.load %arg3[%c0_5, %c0_6] : memref<128x128xf32, #tpu.memory_space<vmem>>, vector<128x128xf32>
    %c0_7 = arith.constant 0 : index
    %c0_8 = arith.constant 0 : index
    %19 = vector.load %arg4[%c0_7, %c0_8] : memref<1x128xf32, #tpu.memory_space<vmem>>, vector<1x128xf32>
    %cst_9 = arith.constant dense<0.000000e+00> : vector<8x128xf32>
    %20 = tpu.matmul %17, %18, %cst_9 {dimension_numbers = #tpu.dot_dimension_numbers<[1], [0], [0], [1], [0, 0, 1, 1], [], []>} : vector<8x128xf32>, vector<128x128xf32>, vector<8x128xf32> -> vector<8x128xf32>
    %21 = vector.broadcast %19 : vector<1x128xf32> to vector<8x128xf32>
    %22 = arith.addf %20, %21 : vector<8x128xf32>
    %cst_10 = arith.constant 0.000000e+00 : f32
    %23 = vector.broadcast %cst_10 : f32 to vector<8x128xf32>
    %24 = arith.maximumf %22, %23 : vector<8x128xf32>
    %c0_11 = arith.constant 0 : index
    %c0_12 = arith.constant 0 : index
    %25 = vector.load %arg5[%c0_11, %c0_12] : memref<128x128xf32, #tpu.memory_space<vmem>>, vector<128x128xf32>
    %c0_13 = arith.constant 0 : index
    %c0_14 = arith.constant 0 : index
    %26 = vector.load %arg6[%c0_13, %c0_14] : memref<1x128xf32, #tpu.memory_space<vmem>>, vector<1x128xf32>
    %cst_15 = arith.constant dense<0.000000e+00> : vector<8x128xf32>
    %27 = tpu.matmul %24, %25, %cst_15 {dimension_numbers = #tpu.dot_dimension_numbers<[1], [0], [0], [1], [0, 0, 1, 1], [], []>} : vector<8x128xf32>, vector<128x128xf32>, vector<8x128xf32> -> vector<8x128xf32>
    %28 = vector.broadcast %26 : vector<1x128xf32> to vector<8x128xf32>
    %29 = arith.addf %27, %28 : vector<8x128xf32>
    %30 = vector.extract_strided_slice %29 {offsets = [0, 0], sizes = [8, 2], strides = [1, 1]} : vector<8x128xf32> to vector<8x2xf32>
    %c0_16 = arith.constant 0 : index
    %c0_17 = arith.constant 0 : index
    %31 = vector.load %arg7[%c0_16, %c0_17] : memref<8x2xf32, #tpu.memory_space<vmem>>, vector<8x2xf32>
    tpu.vector_store %arg7[%c0_16, %c0_17], %30 {strides = array<i32>} : memref<8x2xf32, #tpu.memory_space<vmem>>, vector<8x2xf32>,
    return
  }
}

</mosaic_0001>

<llo_original>
// kernel: tpu_custom_call.1
$region0: #{tpu_custom_call.1}
  #allocation0 [shape = 'u32[]', space=smem, size = 0x4, offset = 0x4, fixed_abs, tag = 'smem constant byte address 0x4 - core index']
  #allocation1 [shape = 'u32[144,128]{1,0:T(1,128)}', space=vmem, size = 0x12000, scoped, tag = 'internal scratch']
  %s0 = inlined_call_operand.vmem [shape: f32[8,2], index: 0, kind: input, shape index: {}]
  %s1 = inlined_call_operand.vmem [shape: f32[2,128], index: 1, kind: input, shape index: {}]
  %s2 = inlined_call_operand.vmem [shape: f32[1,128], index: 2, kind: input, shape index: {}]
  %s3 = inlined_call_operand.hbm [shape: f32[128,128], index: 3, kind: input, shape index: {}]
  %s4 = inlined_call_operand.vmem [shape: f32[1,128], index: 4, kind: input, shape index: {}]
  %s5 = inlined_call_operand.hbm [shape: f32[128,128], index: 5, kind: input, shape index: {}]
  %s6 = inlined_call_operand.vmem [shape: f32[1,128], index: 6, kind: input, shape index: {}]
  %s7 = inlined_call_operand.vmem [shape: f32[8,2], index: 7, kind: output, shape index: {}]
  %s8 = sld [smem:[#allocation0]]
  $region46: #{tpu_custom_call.1} parent=0
    _
  %s10 = ssub.s32 1, %s8
  %s11 = scalar_select 0, %s10, %s8
  $region1: #{tpu_custom_call.1} parent=0
    #allocation2 [shape = 'u8[65536]{0}', space=vmem, size = 0x10000, scoped, tag = 'input window, operand 3, single buffered']
    #allocation3 [shape = 's32[1]{0}', space=sflag, size = 0x4, scoped, tag = 'scoped memory for tpu_custom_call.1']
    #allocation4 [shape = 'u8[65536]{0}', space=vmem, size = 0x10000, scoped, tag = 'input window, operand 5, single buffered']
    #allocation5 [shape = 's32[1]{0}', space=sflag, size = 0x4, scoped, tag = 'scoped memory for tpu_custom_call.1']
    %12 = vsyncpa [#allocation3], 0
    %13 = vsyncpa [#allocation5], 0
    // Predicated region
    $region2: #{tpu_custom_call.1} parent=1 // pred_check
      _
    $region3: #{tpu_custom_call.1} parent=1 // pred_check_branch
      %15 = sbr.rel (0) target = $region5
    $region4: #{tpu_custom_call.1} parent=1 // pred_region
      _
    $region5: #{tpu_custom_call.1} parent=1 // pred_fallthru
      _
    // Predicated region
    $region6: #{tpu_custom_call.1} parent=1 // pred_check
      _
    $region7: #{tpu_custom_call.1} parent=1 // pred_check_branch
      %17 = sbr.rel (0) target = $region9
    $region8: #{tpu_custom_call.1} parent=1 // pred_region
      _
    $region9: #{tpu_custom_call.1} parent=1 // pred_fallthru
      _
    // Predicated region
    $region10: #{tpu_custom_call.1} parent=1 // pred_check
      _
    $region11: #{tpu_custom_call.1} parent=1 // pred_check_branch
      %19 = sbr.rel (0) target = $region13
    $region12: #{tpu_custom_call.1} parent=1 // pred_region
      _
    $region13: #{tpu_custom_call.1} parent=1 // pred_fallthru
      _
    // Predicated region
    $region14: #{tpu_custom_call.1} parent=1 // pred_check
      _
    $region15: #{tpu_custom_call.1} parent=1 // pred_check_branch
      %21 = sbr.rel (0) target = $region17
    $region16: #{tpu_custom_call.1} parent=1 // pred_region
      %s23 = ssub.s32 2048, 2048
      %24 = vsyncadd [#allocation3], %s23
      %s25 = sshll.u32 [#allocation2], 4
      %s26 = int_to_ptr.vmem [resolvable:$true] %s25
      %31 = dma.hbm_to_vmem [thread:$0]  %s3, 2048, %s26, [#allocation3], 128, 128, 8
    $region17: #{tpu_custom_call.1} parent=1 // pred_fallthru
      _
    // Predicated region
    $region18: #{tpu_custom_call.1} parent=1 // pred_check
      _
    $region19: #{tpu_custom_call.1} parent=1 // pred_check_branch
      %33 = sbr.rel (0) target = $region21
    $region20: #{tpu_custom_call.1} parent=1 // pred_region
      _
    $region21: #{tpu_custom_call.1} parent=1 // pred_fallthru
      _
    // Predicated region
    $region22: #{tpu_custom_call.1} parent=1 // pred_check
      _
    $region23: #{tpu_custom_call.1} parent=1 // pred_check_branch
      %35 = sbr.rel (0) target = $region25
    $region24: #{tpu_custom_call.1} parent=1 // pred_region
      %s37 = ssub.s32 2048, 2048
      %38 = vsyncadd [#allocation5], %s37
      %s39 = sshll.u32 [#allocation4], 4
      %s40 = int_to_ptr.vmem [resolvable:$true] %s39
      %45 = dma.hbm_to_vmem [thread:$0]  %s5, 2048, %s40, [#allocation5], 128, 128, 8
    $region25: #{tpu_custom_call.1} parent=1 // pred_fallthru
      _
    // Predicated region
    $region26: #{tpu_custom_call.1} parent=1 // pred_check
      _
    $region27: #{tpu_custom_call.1} parent=1 // pred_check_branch
      %47 = sbr.rel (0) target = $region29
    $region28: #{tpu_custom_call.1} parent=1 // pred_region
      _
    $region29: #{tpu_custom_call.1} parent=1 // pred_fallthru
      _
    // Predicated region
    $region30: #{tpu_custom_call.1} parent=1 // pred_check
      _
    $region31: #{tpu_custom_call.1} parent=1 // pred_check_branch
      %49 = sbr.rel (0) target = $region33
    $region32: #{tpu_custom_call.1} parent=1 // pred_region
      %50 = dma.done [#allocation3], 2048
    $region33: #{tpu_custom_call.1} parent=1 // pred_fallthru
      _
    // Predicated region
    $region34: #{tpu_custom_call.1} parent=1 // pred_check
      _
    $region35: #{tpu_custom_call.1} parent=1 // pred_check_branch
      %52 = sbr.rel (0) target = $region37
    $region36: #{tpu_custom_call.1} parent=1 // pred_region
      %53 = dma.done [#allocation5], 2048
    $region37: #{tpu_custom_call.1} parent=1 // pred_fallthru
      _
    %v54 = vld [vmem:[%s0] sm:$0xff]
    %v55 = vld [vmem:[%s1] sm:$0x3]
    %v56 = vld [vmem:[%s2] sm:$0x1]
    %58 = vset.pattern.permute.xlu0 0
    %59 = vperm.xlu0 %58, %v54
    %v60 = vpop.permute.xlu0 %59
    %v62 = vlaneseq
    %v63 = vshrl.u32 %v62, 7
    %v64 = vsub.s32 0, %v63
    %v65 = vrot.slane %v55, %v64
    %v66 = vmul.f32 %v60, %v65
    %v68 = vlaneseq
    %v69 = vshrl.u32 %v68, 7
    %v70 = vsub.s32 0, %v69
    %v71 = vrot.slane %v56, %v70
    %v73 = vadd.f32 %v71, %v66
    %74 = vset.pattern.permute.xlu0 1
    %75 = vperm.xlu0 %74, %v54
    %v76 = vpop.permute.xlu0 %75
    %v78 = vlaneseq
    %v79 = vshrl.u32 %v78, 7
    %v80 = vsub.s32 1, %v79
    %v81 = vrot.slane %v55, %v80
    %v82 = vmul.f32 %v76, %v81
    %v83 = vadd.f32 %v73, %v82
    %v84 = vmax.f32 %v83, 0.0
    %v85 = vld [vmem:[#allocation2] sm:$0xff]
    %v86 = vld [vmem:[#allocation2 + $0x8] sm:$0xff]
    %v87 = vld [vmem:[#allocation2 + $0x10] sm:$0xff]
    %v88 = vld [vmem:[#allocation2 + $0x18] sm:$0xff]
    %v89 = vld [vmem:[#allocation2 + $0x20] sm:$0xff]
    %v90 = vld [vmem:[#allocation2 + $0x28] sm:$0xff]
    %v91 = vld [vmem:[#allocation2 + $0x30] sm:$0xff]
    %v92 = vld [vmem:[#allocation2 + $0x38] sm:$0xff]
    %v93 = vld [vmem:[#allocation2 + $0x40] sm:$0xff]
    %v94 = vld [vmem:[#allocation2 + $0x48] sm:$0xff]
    %v95 = vld [vmem:[#allocation2 + $0x50] sm:$0xff]
    %v96 = vld [vmem:[#allocation2 + $0x58] sm:$0xff]
    %v97 = vld [vmem:[#allocation2 + $0x60] sm:$0xff]
    %v98 = vld [vmem:[#allocation2 + $0x68] sm:$0xff]
    %v99 = vld [vmem:[#allocation2 + $0x70] sm:$0xff]
    %v100 = vld [vmem:[#allocation2 + $0x78] sm:$0xff]
    %v101 = vld [vmem:[%s4] sm:$0x1]
    %v103 = vlaneseq
    %v104 = vshrl.u32 %v103, 7
    %v105 = vsub.s32 0, %v104
    %v106 = vrot.slane %v101, %v105
    %108 = vmatprep.subr.mxu0 0.0
    %109 = vmatpush1.msra.mxu0 %v85
    %110 = vmatprep.subr.mxu0 0.0
    %111 = vmatpush1.msra.mxu0 %v86
    %112 = vmatprep.subr.mxu0 0.0
    %113 = vmatpush1.msra.mxu0 %v87
    %114 = vmatprep.subr.mxu0 0.0
    %115 = vmatpush1.msra.mxu0 %v88
    %116 = vmatprep.subr.mxu0 0.0
    %117 = vmatpush1.msra.mxu0 %v89
    %118 = vmatprep.subr.mxu0 0.0
    %119 = vmatpush1.msra.mxu0 %v90
    %120 = vmatprep.subr.mxu0 0.0
    %121 = vmatpush1.msra.mxu0 %v91
    %122 = vmatprep.subr.mxu0 0.0
    %123 = vmatpush1.msra.mxu0 %v92
    %124 = vmatprep.subr.mxu0 0.0
    %125 = vmatpush1.msra.mxu0 %v93
    %126 = vmatprep.subr.mxu0 0.0
    %127 = vmatpush1.msra.mxu0 %v94
    %128 = vmatprep.subr.mxu0 0.0
    %129 = vmatpush1.msra.mxu0 %v95
    %130 = vmatprep.subr.mxu0 0.0
    %131 = vmatpush1.msra.mxu0 %v96
    %132 = vmatprep.subr.mxu0 0.0
    %133 = vmatpush1.msra.mxu0 %v97
    %134 = vmatprep.subr.mxu0 0.0
    %135 = vmatpush1.msra.mxu0 %v98
    %136 = vmatprep.subr.mxu0 0.0
    %137 = vmatpush1.msra.mxu0 %v99
    %138 = vmatprep.subr.mxu0 0.0
    %139 = vmatpush1.msra.mxu0 %v100
    %140 = vmatprep.subr.mxu0 0.0
    %141 = vmatpush1.msra.mxu0 0.0
    %142 = vmatprep.subr.mxu0 0.0
    %143 = vmatpush1.msra.mxu0 0.0
    %144 = vmatprep.subr.mxu0 0.0
    %145 = vmatpush1.msra.mxu0 0.0
    %146 = vmatprep.subr.mxu0 0.0
    %147 = vmatpush1.msra.mxu0 0.0
    %148 = vmatprep.subr.mxu0 0.0
    %149 = vmatpush1.msra.mxu0 0.0
    %150 = vmatprep.subr.mxu0 0.0
    %151 = vmatpush1.msra.mxu0 0.0
    %152 = vmatprep.subr.mxu0 0.0
    %153 = vmatpush1.msra.mxu0 0.0
    %154 = vmatprep.subr.mxu0 0.0
    %155 = vmatpush1.msra.mxu0 0.0
    %156 = vmatprep.subr.mxu0 0.0
    %157 = vmatpush1.msra.mxu0 0.0
    %158 = vmatprep.subr.mxu0 0.0
    %159 = vmatpush1.msra.mxu0 0.0
    %160 = vmatprep.subr.mxu0 0.0
    %161 = vmatpush1.msra.mxu0 0.0
    %162 = vmatprep.subr.mxu0 0.0
    %163 = vmatpush1.msra.mxu0 0.0
    %164 = vmatprep.subr.mxu0 0.0
    %165 = vmatpush1.msra.mxu0 0.0
    %166 = vmatprep.subr.mxu0 0.0
    %167 = vmatpush1.msra.mxu0 0.0
    %168 = vmatprep.subr.mxu0 0.0
    %169 = vmatpush1.msra.mxu0 0.0
    %170 = vmatprep.subr.mxu0 0.0
    %171 = vmatpush1.msra.mxu0 0.0
    %172 = vmatprep.mubr.f32.mxu0 0.0
    %173 = vmatmul.mubr.f32.gmra.mrb[0].mxu0 %v84
    %v174 = vpop.f32.mrb[0].mxu0
    %v175 = vadd.f32 %v106, %v174
    %v176 = vpop.f32.mrb[0].mxu0
    %177 = vdwg.mxu0
    %v178 = vmax.f32 %v175, 0.0
    %v179 = vld [vmem:[#allocation4] sm:$0xff]
    %v180 = vld [vmem:[#allocation4 + $0x8] sm:$0xff]
    %v181 = vld [vmem:[#allocation4 + $0x10] sm:$0xff]
    %v182 = vld [vmem:[#allocation4 + $0x18] sm:$0xff]
    %v183 = vld [vmem:[#allocation4 + $0x20] sm:$0xff]
    %v184 = vld [vmem:[#allocation4 + $0x28] sm:$0xff]
    %v185 = vld [vmem:[#allocation4 + $0x30] sm:$0xff]
    %v186 = vld [vmem:[#allocation4 + $0x38] sm:$0xff]
    %v187 = vld [vmem:[#allocation4 + $0x40] sm:$0xff]
    %v188 = vld [vmem:[#allocation4 + $0x48] sm:$0xff]
    %v189 = vld [vmem:[#allocation4 + $0x50] sm:$0xff]
    %v190 = vld [vmem:[#allocation4 + $0x58] sm:$0xff]
    %v191 = vld [vmem:[#allocation4 + $0x60] sm:$0xff]
    %v192 = vld [vmem:[#allocation4 + $0x68] sm:$0xff]
    %v193 = vld [vmem:[#allocation4 + $0x70] sm:$0xff]
    %v194 = vld [vmem:[#allocation4 + $0x78] sm:$0xff]
    %v195 = vld [vmem:[%s6] sm:$0x1]
    %v197 = vlaneseq
    %v198 = vshrl.u32 %v197, 7
    %v199 = vsub.s32 0, %v198
    %v200 = vrot.slane %v195, %v199
    %202 = vmatprep.subr.mxu0 0.0
    %203 = vmatpush1.msra.mxu0 %v179
    %204 = vmatprep.subr.mxu0 0.0
    %205 = vmatpush1.msra.mxu0 %v180
    %206 = vmatprep.subr.mxu0 0.0
    %207 = vmatpush1.msra.mxu0 %v181
    %208 = vmatprep.subr.mxu0 0.0
    %209 = vmatpush1.msra.mxu0 %v182
    %210 = vmatprep.subr.mxu0 0.0
    %211 = vmatpush1.msra.mxu0 %v183
    %212 = vmatprep.subr.mxu0 0.0
    %213 = vmatpush1.msra.mxu0 %v184
    %214 = vmatprep.subr.mxu0 0.0
    %215 = vmatpush1.msra.mxu0 %v185
    %216 = vmatprep.subr.mxu0 0.0
    %217 = vmatpush1.msra.mxu0 %v186
    %218 = vmatprep.subr.mxu0 0.0
    %219 = vmatpush1.msra.mxu0 %v187
    %220 = vmatprep.subr.mxu0 0.0
    %221 = vmatpush1.msra.mxu0 %v188
    %222 = vmatprep.subr.mxu0 0.0
    %223 = vmatpush1.msra.mxu0 %v189
    %224 = vmatprep.subr.mxu0 0.0
    %225 = vmatpush1.msra.mxu0 %v190
    %226 = vmatprep.subr.mxu0 0.0
    %227 = vmatpush1.msra.mxu0 %v191
    %228 = vmatprep.subr.mxu0 0.0
    %229 = vmatpush1.msra.mxu0 %v192
    %230 = vmatprep.subr.mxu0 0.0
    %231 = vmatpush1.msra.mxu0 %v193
    %232 = vmatprep.subr.mxu0 0.0
    %233 = vmatpush1.msra.mxu0 %v194
    %234 = vmatprep.subr.mxu0 0.0
    %235 = vmatpush1.msra.mxu0 0.0
    %236 = vmatprep.subr.mxu0 0.0
    %237 = vmatpush1.msra.mxu0 0.0
    %238 = vmatprep.subr.mxu0 0.0
    %239 = vmatpush1.msra.mxu0 0.0
    %240 = vmatprep.subr.mxu0 0.0
    %241 = vmatpush1.msra.mxu0 0.0
    %242 = vmatprep.subr.mxu0 0.0
    %243 = vmatpush1.msra.mxu0 0.0
    %244 = vmatprep.subr.mxu0 0.0
    %245 = vmatpush1.msra.mxu0 0.0
    %246 = vmatprep.subr.mxu0 0.0
    %247 = vmatpush1.msra.mxu0 0.0
    %248 = vmatprep.subr.mxu0 0.0
    %249 = vmatpush1.msra.mxu0 0.0
    %250 = vmatprep.subr.mxu0 0.0
    %251 = vmatpush1.msra.mxu0 0.0
    %252 = vmatprep.subr.mxu0 0.0
    %253 = vmatpush1.msra.mxu0 0.0
    %254 = vmatprep.subr.mxu0 0.0
    %255 = vmatpush1.msra.mxu0 0.0
    %256 = vmatprep.subr.mxu0 0.0
    %257 = vmatpush1.msra.mxu0 0.0
    %258 = vmatprep.subr.mxu0 0.0
    %259 = vmatpush1.msra.mxu0 0.0
    %260 = vmatprep.subr.mxu0 0.0
    %261 = vmatpush1.msra.mxu0 0.0
    %262 = vmatprep.subr.mxu0 0.0
    %263 = vmatpush1.msra.mxu0 0.0
    %264 = vmatprep.subr.mxu0 0.0
    %265 = vmatpush1.msra.mxu0 0.0
    %266 = vmatprep.mubr.f32.mxu0 0.0
    %267 = vmatmul.mubr.f32.gmra.mrb[0].mxu0 %v178
    %v268 = vpop.f32.mrb[0].mxu0
    %v269 = vadd.f32 %v200, %v268
    %v270 = vpop.f32.mrb[0].mxu0
    %271 = vdwg.mxu0
    %vm272 = vcmask 15360
    %273 = vst.msk [vmem:[%s7] sm:$0xff] %vm272, %v269
    // Predicated region
    $region38: #{tpu_custom_call.1} parent=1 // pred_check
      _
    $region39: #{tpu_custom_call.1} parent=1 // pred_check_branch
      %275 = sbr.rel (0) target = $region41
    $region40: #{tpu_custom_call.1} parent=1 // pred_region
      _
    $region41: #{tpu_custom_call.1} parent=1 // pred_fallthru
      _
    // Predicated region
    $region42: #{tpu_custom_call.1} parent=1 // pred_check
      _
    $region43: #{tpu_custom_call.1} parent=1 // pred_check_branch
      %277 = sbr.rel (0) target = $region45
    $region44: #{tpu_custom_call.1} parent=1 // pred_region
      _
    $region45: #{tpu_custom_call.1} parent=1 // pred_fallthru
      _
    %278 = vsyncpa [#allocation3], 1
    %279 = vsyncpa [#allocation5], 1

</llo_original>
